<compile_context>
chip_gen: v5e
topology: v5e:2x2
jax: 0.10.0
libtpu: 0.0.40
codegen_flags: <defaults>
</compile_context>

<pallas_src>
import functools

import jax
import jax.numpy as jnp
from jax import lax
from jax.experimental import pallas as pl
from jax.experimental.pallas import tpu as pltpu


def _afr_kernel(x_ref, w0_ref, w1_ref, b0_ref, b1_ref, o_ref, *, use_bf16_matmul):
    # Fold the two linears inside the kernel: tiny [N,K]/[1,N] VPU adds that are
    # fully hidden under the x/out DMA (weights & biases are grid-resident).
    w = w0_ref[...].astype(jnp.float32) + w1_ref[...].astype(jnp.float32)   # [N, K]
    b = b0_ref[...].astype(jnp.float32) + b1_ref[...].astype(jnp.float32)   # [1, N]
    x = x_ref[...]

    if use_bf16_matmul:
        # Cast inside the kernel (free on the VPU under the DMA bound) instead of
        # in the wrapper, which would be an extra un-fused HBM pass over x.
        x = x.astype(jnp.bfloat16)
        w = w.astype(jnp.bfloat16)

    # Single MXU matmul; contract the K axis of the [N, K] weight directly so
    # there is no in-kernel XLU transpose.
    acc = lax.dot_general(
        x, w,
        dimension_numbers=(((1,), (1,)), ((), ())),
        preferred_element_type=jnp.float32,
    )
    # Bias add + cast stay in f32 on the VPU (v5e has no bf16 VPU path).
    o_ref[...] = (acc + b).astype(o_ref.dtype)


def _round_up(v, m):
    return ((v + m - 1) // m) * m


def afr_forward(x, w0, b0, w1, b1, *, use_bf16_matmul=False, block_m=2048):
    """Fused AFR forward: (x @ w0.T + b0) + (x @ w1.T + b1).

    x: [M, K]; w0, w1: [N, K]; b0, b1: [N].  Returns [M, N] in x.dtype.
    """
    M, K = x.shape
    N = w0.shape[0]
    out_dtype = x.dtype

    # Cheap (metadata-only) reshapes so the biases are 2-D VMEM blocks.
    b0_2d = b0.reshape(1, N)
    b1_2d = b1.reshape(1, N)

    # Tile over the batch dimension.  Pick the largest tile up to block_m, but
    # keep >= 2 grid steps whenever M allows it so v7x's 2nd TensorCore gets
    # work under dimension_semantics=("parallel",).  tm is always a multiple of
    # 8 (sublane constraint); Pallas masks the ragged last block, so no
    # wrapper-side pad/slice is needed.
    if M <= 8:
        tm = 8
    else:
        tm = min(block_m, _round_up(pl.cdiv(M, 2), 8))
    grid = (pl.cdiv(M, tm),)

    # VMEM budget guard: resident weights/biases + double-buffered x/out tiles.
    # TODO(synk): if the resident [N, K] weights ever approach the VMEM budget
    # (v7x physical VMEM is 64 MiB), add a K grid axis marked "arbitrary" with
    # an f32 VMEM accumulator instead of keeping the full weights resident.
    w_itemsize = jnp.dtype(w0.dtype).itemsize
    x_itemsize = jnp.dtype(x.dtype).itemsize
    o_itemsize = jnp.dtype(out_dtype).itemsize
    vmem_limit_bytes = 32 * 1024 * 1024
    resident_bytes = 2 * (N * K + N) * w_itemsize
    pipelined_bytes = 2 * tm * (K * x_itemsize + N * o_itemsize)
    assert resident_bytes + pipelined_bytes <= vmem_limit_bytes, (
        f"AFR kernel VMEM estimate {resident_bytes + pipelined_bytes} B exceeds "
        f"{vmem_limit_bytes} B; tile K or shrink block_m."
    )

    cost = pl.CostEstimate(
        flops=2 * M * K * N,
        transcendentals=0,
        bytes_accessed=int(
            M * K * x_itemsize            # x
            + 2 * N * K * w_itemsize      # w0, w1
            + 2 * N * w_itemsize          # b0, b1
            + M * N * o_itemsize          # out
        ),
    )

    kernel = functools.partial(_afr_kernel, use_bf16_matmul=use_bf16_matmul)

    out = pl.pallas_call(
        kernel,
        out_shape=jax.ShapeDtypeStruct((M, N), out_dtype),
        grid=grid,
        in_specs=[
            pl.BlockSpec((tm, K), lambda i: (i, 0)),   # x tile (pipelined)
            pl.BlockSpec((N, K), lambda i: (0, 0)),    # w0 (resident)
            pl.BlockSpec((N, K), lambda i: (0, 0)),    # w1 (resident)
            pl.BlockSpec((1, N), lambda i: (0, 0)),    # b0 (resident)
            pl.BlockSpec((1, N), lambda i: (0, 0)),    # b1 (resident)
        ],
        out_specs=pl.BlockSpec((tm, N), lambda i: (i, 0)),
        compiler_params=pltpu.CompilerParams(
            dimension_semantics=("parallel",),
            vmem_limit_bytes=vmem_limit_bytes,
        ),
        cost_estimate=cost,
    )(x, w0, w1, b0_2d, b1_2d)

    # TODO(synk): N=16 output stores are lane-sparse (16/128 lanes per vst).
    # Making them lane-dense needs either >=8 AFR heads batched so the output
    # last dim is a multiple of 128 (interface change), or a transposed [N, M]
    # output plus a wrapper transpose-back (an extra HBM pass + dispatch that
    # outweighs the store win at these small-N shapes), so it is left as-is.
    return out


if __name__ == "__main__":
    key = jax.random.PRNGKey(0)
    k_x, k_w0, k_b0, k_w1, k_b1, k_x2 = jax.random.split(key, 6)

    # Shapes consistent with the forward: batch=8, in_features=32, out_features=16
    M, K, N = 8, 32, 16
    x = jax.random.normal(k_x, (M, K), dtype=jnp.float32)

    # "old" frozen weights (w0, b0)
    w0 = jax.random.normal(k_w0, (N, K), dtype=jnp.float32) * 0.1
    b0 = jax.random.normal(k_b0, (N,), dtype=jnp.float32) * 0.1

    # nn.Linear(K, N) PyTorch-style init: uniform(-1/sqrt(K), 1/sqrt(K))
    bound = 1.0 / (K ** 0.5)
    w1 = jax.random.uniform(k_w1, (N, K), minval=-bound, maxval=bound, dtype=jnp.float32)
    b1 = jax.random.uniform(k_b1, (N,), minval=-bound, maxval=bound, dtype=jnp.float32)

    ref = (x @ w0.T + b0) + (x @ w1.T + b1)

    # f32 path (single block, launch-bound case)
    out = jax.block_until_ready(afr_forward(x, w0, b0, w1, b1))
    assert out.shape == (M, N)
    assert jnp.allclose(out, ref, atol=1e-4, rtol=1e-4)

    # bf16-matmul path (v6e/v7x MXU lever, cast in-kernel); f32 accumulate
    out_bf16 = jax.block_until_ready(
        afr_forward(x, w0, b0, w1, b1, use_bf16_matmul=True))
    assert jnp.allclose(out_bf16, ref, atol=6e-2, rtol=5e-2)

    # Ragged / multi-step path: M not a multiple of the tile, >=2 grid steps,
    # exercising resident weights, masked ragged writes, and megacore sharding.
    M2 = 300
    x2 = jax.random.normal(k_x2, (M2, K), dtype=jnp.float32)
    ref2 = (x2 @ w0.T + b0) + (x2 @ w1.T + b1)
    out2 = jax.block_until_ready(afr_forward(x2, w0, b0, w1, b1))
    assert out2.shape == (M2, N)
    assert jnp.allclose(out2, ref2, atol=1e-4, rtol=1e-4)

    print("KERNEL_OK")
</pallas_src>

<mosaic_0001>
module attributes {stable_mosaic.version = 11 : i64} {
  func.func @_afr_kernel(%arg0: i32, %arg1: memref<8x32xf32, #tpu.memory_space<vmem>>, %arg2: memref<16x32xf32, #tpu.memory_space<vmem>>, %arg3: memref<16x32xf32, #tpu.memory_space<vmem>>, %arg4: memref<1x16xf32, #tpu.memory_space<vmem>>, %arg5: memref<1x16xf32, #tpu.memory_space<vmem>>, %arg6: memref<8x16xf32, #tpu.memory_space<vmem>>) attributes {dimension_semantics = [#tpu.dimension_semantics<parallel>], iteration_bounds = array<i64: 1>, scalar_prefetch = 0 : i64, scratch_operands = 0 : i64, tpu.core_type = #tpu.core_type<tc>, window_params = [{transform_indices = @transform_0, window_bounds = array<i64: 8, 32>}, {pipeline_mode = #tpu.pipeline_mode<synchronous>, transform_indices = @transform_1, window_bounds = array<i64: 16, 32>}, {pipeline_mode = #tpu.pipeline_mode<synchronous>, transform_indices = @transform_2, window_bounds = array<i64: 16, 32>}, {pipeline_mode = #tpu.pipeline_mode<synchronous>, transform_indices = @transform_3, window_bounds = array<i64: 1, 16>}, {pipeline_mode = #tpu.pipeline_mode<synchronous>, transform_indices = @transform_4, window_bounds = array<i64: 1, 16>}, {transform_indices = @transform_5, window_bounds = array<i64: 8, 16>}]} {
    %c0 = arith.constant 0 : index
    %c0_0 = arith.constant 0 : index
    %0 = vector.load %arg2[%c0, %c0_0] : memref<16x32xf32, #tpu.memory_space<vmem>>, vector<16x32xf32>
    %c0_1 = arith.constant 0 : index
    %c0_2 = arith.constant 0 : index
    %1 = vector.load %arg3[%c0_1, %c0_2] : memref<16x32xf32, #tpu.memory_space<vmem>>, vector<16x32xf32>
    %2 = arith.addf %0, %1 : vector<16x32xf32>
    %c0_3 = arith.constant 0 : index
    %c0_4 = arith.constant 0 : index
    %3 = vector.load %arg4[%c0_3, %c0_4] : memref<1x16xf32, #tpu.memory_space<vmem>>, vector<1x16xf32>
    %c0_5 = arith.constant 0 : index
    %c0_6 = arith.constant 0 : index
    %4 = vector.load %arg5[%c0_5, %c0_6] : memref<1x16xf32, #tpu.memory_space<vmem>>, vector<1x16xf32>
    %5 = arith.addf %3, %4 : vector<1x16xf32>
    %c0_7 = arith.constant 0 : index
    %c0_8 = arith.constant 0 : index
    %6 = vector.load %arg1[%c0_7, %c0_8] : memref<8x32xf32, #tpu.memory_space<vmem>>, vector<8x32xf32>
    %cst = arith.constant dense<0.000000e+00> : vector<8x16xf32>
    %7 = tpu.matmul %6, %2, %cst {dimension_numbers = #tpu.dot_dimension_numbers<[1], [1], [0], [0], [0, 0, 1, 0], [], []>} : vector<8x32xf32>, vector<16x32xf32>, vector<8x16xf32> -> vector<8x16xf32>
    %8 = vector.broadcast %5 : vector<1x16xf32> to vector<8x16xf32>
    %9 = arith.addf %7, %8 : vector<8x16xf32>
    %c0_9 = arith.constant 0 : index
    %c0_10 = arith.constant 0 : index
    %10 = vector.load %arg6[%c0_9, %c0_10] : memref<8x16xf32, #tpu.memory_space<vmem>>, vector<8x16xf32>
    tpu.vector_store %arg6[%c0_9, %c0_10], %9 {strides = array<i32>} : memref<8x16xf32, #tpu.memory_space<vmem>>, vector<8x16xf32>,
    return
  }
  func.func @transform_0(%arg0: i32) -> (i32, i32) {
    %c0_i32 = arith.constant 0 : i32
    %c0_i32_0 = arith.constant 0 : i32
    return %arg0, %c0_i32 : i32, i32
  }
  func.func @transform_1(%arg0: i32) -> (i32, i32) {
    %c0_i32 = arith.constant 0 : i32
    %c0_i32_0 = arith.constant 0 : i32
    %c0_i32_1 = arith.constant 0 : i32
    return %c0_i32, %c0_i32_0 : i32, i32
  }
  func.func @transform_2(%arg0: i32) -> (i32, i32) {
    %c0_i32 = arith.constant 0 : i32
    %c0_i32_0 = arith.constant 0 : i32
    %c0_i32_1 = arith.constant 0 : i32
    return %c0_i32, %c0_i32_0 : i32, i32
  }
  func.func @transform_3(%arg0: i32) -> (i32, i32) {
    %c0_i32 = arith.constant 0 : i32
    %c0_i32_0 = arith.constant 0 : i32
    %c0_i32_1 = arith.constant 0 : i32
    return %c0_i32, %c0_i32_0 : i32, i32
  }
  func.func @transform_4(%arg0: i32) -> (i32, i32) {
    %c0_i32 = arith.constant 0 : i32
    %c0_i32_0 = arith.constant 0 : i32
    %c0_i32_1 = arith.constant 0 : i32
    return %c0_i32, %c0_i32_0 : i32, i32
  }
  func.func @transform_5(%arg0: i32) -> (i32, i32) {
    %c0_i32 = arith.constant 0 : i32
    %c0_i32_0 = arith.constant 0 : i32
    return %arg0, %c0_i32 : i32, i32
  }
}

</mosaic_0001>

<llo_original>
// kernel: tpu_custom_call.1
$region0: #{tpu_custom_call.1}
  #allocation0 [shape = 'u32[]', space=smem, size = 0x4, offset = 0x4, fixed_abs, tag = 'smem constant byte address 0x4 - core index']
  #allocation1 [shape = 'u32[72,128]{1,0:T(1,128)}', space=vmem, size = 0x9000, scoped, tag = 'internal scratch']
  %s0 = inlined_call_operand.hbm [shape: f32[8,32], index: 0, kind: input, shape index: {}]
  %s1 = inlined_call_operand.hbm [shape: f32[16,32], index: 1, kind: input, shape index: {}]
  %s2 = inlined_call_operand.hbm [shape: f32[16,32], index: 2, kind: input, shape index: {}]
  %s3 = inlined_call_operand.vmem [shape: f32[1,16], index: 3, kind: input, shape index: {}]
  %s4 = inlined_call_operand.vmem [shape: f32[1,16], index: 4, kind: input, shape index: {}]
  %s5 = inlined_call_operand.hbm [shape: f32[8,16], index: 5, kind: output, shape index: {}]
  %s6 = sld [smem:[#allocation0]]
  $region42: #{tpu_custom_call.1} parent=0
    _
  %s8 = ssub.s32 1, %s6
  %s9 = scalar_select 0, %s8, %s6
  $region1: #{tpu_custom_call.1} parent=0
    #allocation2 [shape = 'u8[4096]{0}', space=vmem, size = 0x1000, scoped, tag = 'input window, operand 0, single buffered']
    #allocation3 [shape = 's32[1]{0}', space=sflag, size = 0x4, scoped, tag = 'scoped memory for tpu_custom_call.1']
    #allocation4 [shape = 's32[1]{0}', space=sflag, size = 0x4, scoped, tag = 'scoped memory for tpu_custom_call.1']
    #allocation5 [shape = 'u8[8192]{0}', space=vmem, size = 0x2000, scoped, tag = 'input window, operand 1, single buffered']
    #allocation6 [shape = 's32[1]{0}', space=sflag, size = 0x4, scoped, tag = 'scoped memory for tpu_custom_call.1']
    #allocation7 [shape = 'u8[8192]{0}', space=vmem, size = 0x2000, scoped, tag = 'input window, operand 2, single buffered']
    #allocation8 [shape = 'u8[4096]{0}', space=vmem, size = 0x1000, scoped, tag = 'output window, operand 0, single buffered']
    %10 = vsyncpa [#allocation3], 0
    %11 = vsyncpa [#allocation6], 0
    %12 = vsyncpa [#allocation4], 0
    // Predicated region
    $region2: #{tpu_custom_call.1} parent=1 // pred_check
      _
    $region3: #{tpu_custom_call.1} parent=1 // pred_check_branch
      %14 = sbr.rel (0) target = $region5
    $region4: #{tpu_custom_call.1} parent=1 // pred_region
      %16 = vsyncadd [#allocation3], 0
      %s18 = sshll.u32 %s0, 4
      %s19 = int_to_ptr.hbm [resolvable:$true] %s18
      %s20 = sshll.u32 [#allocation2], 4
      %s21 = int_to_ptr.vmem [resolvable:$true] %s20
      %23 = dma.hbm_to_vmem [thread:$0]  %s19, 128, %s21, [#allocation3]
    $region5: #{tpu_custom_call.1} parent=1 // pred_fallthru
      _
    // Predicated region
    $region6: #{tpu_custom_call.1} parent=1 // pred_check
      _
    $region7: #{tpu_custom_call.1} parent=1 // pred_check_branch
      %25 = sbr.rel (0) target = $region9
    $region8: #{tpu_custom_call.1} parent=1 // pred_region
      %27 = vsyncadd [#allocation6], 0
      %s28 = sshll.u32 %s1, 4
      %s29 = int_to_ptr.hbm [resolvable:$true] %s28
      %s30 = sshll.u32 [#allocation5], 4
      %s31 = int_to_ptr.vmem [resolvable:$true] %s30
      %36 = dma.hbm_to_vmem [thread:$0]  %s29, 256, %s31, [#allocation6], 128, 128, 8
    $region9: #{tpu_custom_call.1} parent=1 // pred_fallthru
      _
    // Predicated region
    $region10: #{tpu_custom_call.1} parent=1 // pred_check
      _
    $region11: #{tpu_custom_call.1} parent=1 // pred_check_branch
      %38 = sbr.rel (0) target = $region13
    $region12: #{tpu_custom_call.1} parent=1 // pred_region
      %40 = vsyncadd [#allocation6], 0
      %s41 = sshll.u32 %s2, 4
      %s42 = int_to_ptr.hbm [resolvable:$true] %s41
      %s43 = sshll.u32 [#allocation7], 4
      %s44 = int_to_ptr.vmem [resolvable:$true] %s43
      %49 = dma.hbm_to_vmem [thread:$0]  %s42, 256, %s44, [#allocation6], 128, 128, 8
    $region13: #{tpu_custom_call.1} parent=1 // pred_fallthru
      _
    // Predicated region
    $region14: #{tpu_custom_call.1} parent=1 // pred_check
      _
    $region15: #{tpu_custom_call.1} parent=1 // pred_check_branch
      %51 = sbr.rel (0) target = $region17
    $region16: #{tpu_custom_call.1} parent=1 // pred_region
      _
    $region17: #{tpu_custom_call.1} parent=1 // pred_fallthru
      _
    // Predicated region
    $region18: #{tpu_custom_call.1} parent=1 // pred_check
      _
    $region19: #{tpu_custom_call.1} parent=1 // pred_check_branch
      %53 = sbr.rel (0) target = $region21
    $region20: #{tpu_custom_call.1} parent=1 // pred_region
      _
    $region21: #{tpu_custom_call.1} parent=1 // pred_fallthru
      _
    // Predicated region
    $region22: #{tpu_custom_call.1} parent=1 // pred_check
      _
    $region23: #{tpu_custom_call.1} parent=1 // pred_check_branch
      %55 = sbr.rel (0) target = $region25
    $region24: #{tpu_custom_call.1} parent=1 // pred_region
      %57 = dma.done [#allocation3], 128
    $region25: #{tpu_custom_call.1} parent=1 // pred_fallthru
      _
    // Predicated region
    $region26: #{tpu_custom_call.1} parent=1 // pred_check
      _
    $region27: #{tpu_custom_call.1} parent=1 // pred_check_branch
      %59 = sbr.rel (0) target = $region29
    $region28: #{tpu_custom_call.1} parent=1 // pred_region
      %61 = dma.done [#allocation6], 256
    $region29: #{tpu_custom_call.1} parent=1 // pred_fallthru
      _
    // Predicated region
    $region30: #{tpu_custom_call.1} parent=1 // pred_check
      _
    $region31: #{tpu_custom_call.1} parent=1 // pred_check_branch
      %63 = sbr.rel (0) target = $region33
    $region32: #{tpu_custom_call.1} parent=1 // pred_region
      %65 = dma.done [#allocation6], 256
    $region33: #{tpu_custom_call.1} parent=1 // pred_fallthru
      _
    %v66 = vld [vmem:[#allocation5] sm:$0xff]
    %v67 = vld [vmem:[#allocation5 + $0x8] sm:$0xff]
    %v68 = vld [vmem:[#allocation7] sm:$0xff]
    %v69 = vld [vmem:[#allocation7 + $0x8] sm:$0xff]
    %v70 = vadd.f32 %v66, %v68
    %v71 = vadd.f32 %v67, %v69
    %v72 = vld [vmem:[%s3] sm:$0x1]
    %v73 = vld [vmem:[%s4] sm:$0x1]
    %v74 = vadd.f32 %v72, %v73
    %v75 = vld [vmem:[#allocation2] sm:$0xff]
    %v77 = vperm.slane %v74, 0
    %vm79 = vcmask 261120
    %v81 = vsel %vm79, %v75, 0
    %v84 = vsel %vm79, %v70, 0
    %v87 = vsel %vm79, %v71, 0
    %89 = vmatpush.xpose.msra.mxu0 0.0
    %90 = vmatpush.xpose.msra.mxu0 0.0
    %91 = vmatpush.xpose.msra.mxu0 0.0
    %92 = vmatpush.xpose.msra.mxu0 0.0
    %93 = vmatpush.xpose.msra.mxu0 0.0
    %94 = vmatpush.xpose.msra.mxu0 0.0
    %95 = vmatpush.xpose.msra.mxu0 0.0
    %96 = vmatpush.xpose.msra.mxu0 0.0
    %97 = vmatpush.xpose.msra.mxu0 0.0
    %98 = vmatpush.xpose.msra.mxu0 0.0
    %99 = vmatpush.xpose.msra.mxu0 0.0
    %100 = vmatpush.xpose.msra.mxu0 0.0
    %101 = vmatpush.xpose.msra.mxu0 0.0
    %102 = vmatpush.xpose.msra.mxu0 0.0
    %103 = vmatpush.xpose.msra.mxu0 %v87
    %104 = vmatpush.xpose.msra.mxu0 %v84
    %105 = vmatmul.f32.gmra.mxu0 %v81
    %v106 = vpop.f32.mrf.mxu0
    %v107 = vadd.f32 %v77, %v106
    %108 = vdwg.mxu0
    %vm109 = vcmask 130048
    %110 = vst.msk [vmem:[#allocation8] sm:$0xff] %vm109, %v107
    // Predicated region
    $region34: #{tpu_custom_call.1} parent=1 // pred_check
      _
    $region35: #{tpu_custom_call.1} parent=1 // pred_check_branch
      %112 = sbr.rel (0) target = $region37
    $region36: #{tpu_custom_call.1} parent=1 // pred_region
      %114 = vsyncadd [#allocation4], 0
      %s116 = sshll.u32 [#allocation8], 4
      %s117 = int_to_ptr.vmem [resolvable:$true] %s116
      %s118 = sshll.u32 %s5, 4
      %s119 = int_to_ptr.hbm [resolvable:$true] %s118
      %121 = dma.vmem_to_hbm [thread:$0]  %s117, 128, %s119, [#allocation4]
    $region37: #{tpu_custom_call.1} parent=1 // pred_fallthru
      _
    // Predicated region
    $region38: #{tpu_custom_call.1} parent=1 // pred_check
      _
    $region39: #{tpu_custom_call.1} parent=1 // pred_check_branch
      %123 = sbr.rel (0) target = $region41
    $region40: #{tpu_custom_call.1} parent=1 // pred_region
      %125 = dma.done [#allocation4], 128
    $region41: #{tpu_custom_call.1} parent=1 // pred_fallthru
      _
    %126 = vsyncpa [#allocation3], 1
    %127 = vsyncpa [#allocation6], 1
    %128 = vsyncpa [#allocation4], 1

</llo_original>
